<compile_context>
chip_gen: v7x
topology: tpu7x:2x2x1
jax: 0.10.0
libtpu: 0.0.40
codegen_flags: <defaults>
</compile_context>

<pallas_src>
import jax
import jax.numpy as jnp
from jax.experimental import pallas as pl
from jax.experimental.pallas import tpu as pltpu

C_IN = 3
C_OUT = 32
KH = KW = 3
K_FLAT = KH * KW * C_IN          # 27
K_PAD = 32                       # contraction dim zero-padded to a multiple of 8
LANE = 128


def _make_conv_kernel(H, W):
    """Kernel closure over the static spatial dims."""
    Wp = W + 2                   # padded row width == row stride of the flat image
    N = H * Wp                   # columns computed per batch (padded-width layout)

    def kernel(w_ref, b_ref, x_ref, o_ref):
        # w_ref: (C_OUT, K_PAD)   flattened conv weights, cols 27..31 are zero
        # b_ref: (C_OUT, 1)       bias column
        # x_ref: (C_IN, L_PAD)    one zero-padded image, rows flattened (stride Wp)
        # o_ref: (C_OUT, H*W)     compact NCHW-flat output for this batch element
        x = x_ref[...]

        # Fused im2col: tap (kh, kw) of the 3x3 window over ALL output pixels is a
        # single static shift of the flattened padded image by kh*Wp + kw.
        taps = [x[:, kh * Wp + kw: kh * Wp + kw + N]              # (C_IN, N) each
                for kh in range(KH) for kw in range(KW)]
        taps.append(jnp.zeros((K_PAD - K_FLAT, N), x.dtype))       # pad K: 27 -> 32
        patches = jnp.concatenate(taps, axis=0)                    # (K_PAD, N)

        acc = jnp.dot(w_ref[...], patches,
                      preferred_element_type=jnp.float32)          # (C_OUT, N)
        acc = (acc + b_ref[...]).astype(o_ref.dtype)

        # Compact padded-width rows (Wp cols) down to W cols inside VMEM so the
        # output DMA is already the final NCHW-flat layout (no HBM slice/transpose).
        for h in range(H):
            o_ref[:, h * W:(h + 1) * W] = acc[:, h * Wp: h * Wp + W]

    return kernel


@jax.jit
def conv2d_3x32(x_nchw, weight, bias):
    """Conv2d(3, 32, 3, stride=1, padding=1, bias=True); NCHW in / NCHW out."""
    B, C, H, W = x_nchw.shape
    assert C == C_IN
    Hp, Wp = H + 2, W + 2
    N = H * Wp                               # columns per batch in padded-width layout
    max_off = 2 * Wp + 2                     # largest tap shift
    L_PAD = pl.cdiv(N + max_off, LANE) * LANE    # >= Hp*Wp, lane aligned

    # Cheap wrapper-side layout prep on the 3-channel input only (~3M floats):
    # spatial zero border, row-flatten, zero tail so every tap slice stays in range.
    x_pad = jnp.pad(x_nchw.astype(jnp.float32), ((0, 0), (0, 0), (1, 1), (1, 1)))
    x_flat = x_pad.reshape(B, C_IN, Hp * Wp)
    x_flat = jnp.pad(x_flat, ((0, 0), (0, 0), (0, L_PAD - Hp * Wp)))

    # weight (Cout, Cin, KH, KW) -> (Cout, KH, KW, Cin) -> (Cout, 27) -> pad to 32,
    # matching the patch row ordering k = (kh*KW + kw)*C_IN + c.
    w_flat = weight.transpose(0, 2, 3, 1).reshape(C_OUT, K_FLAT).astype(jnp.float32)
    w_flat = jnp.pad(w_flat, ((0, 0), (0, K_PAD - K_FLAT)))
    b_col = bias.reshape(C_OUT, 1).astype(jnp.float32)

    kernel = _make_conv_kernel(H, W)

    out_flat = pl.pallas_call(
        kernel,
        out_shape=jax.ShapeDtypeStruct((B, C_OUT, H * W), jnp.float32),
        grid_spec=pltpu.PrefetchScalarGridSpec(
            num_scalar_prefetch=0,
            grid=(B,),
            in_specs=[
                pl.BlockSpec((C_OUT, K_PAD), lambda b: (0, 0)),          # resident weights
                pl.BlockSpec((C_OUT, 1), lambda b: (0, 0)),              # resident bias
                pl.BlockSpec((None, C_IN, L_PAD), lambda b: (b, 0, 0)),  # one image
            ],
            out_specs=pl.BlockSpec((None, C_OUT, H * W), lambda b: (b, 0, 0)),
        ),
        compiler_params=pltpu.CompilerParams(
            dimension_semantics=("parallel",),      # batch steps split across v7x TCs
            vmem_limit_bytes=48 * 1024 * 1024,      # stays inside v7x's 64 MiB VMEM
        ),
    )(w_flat, b_col, x_flat)

    # Pure row-major reshape — no NCHW transpose, no slice, no extra HBM pass.
    return out_flat.reshape(B, C_OUT, H, W)


if __name__ == "__main__":
    key = jax.random.PRNGKey(0)
    k_x, k_w, k_b = jax.random.split(key, 3)

    # Small deterministic inputs / parameters (synthetic init, no checkpoint).
    B, H, W = 2, 16, 16
    x = jax.random.normal(k_x, (B, C_IN, H, W), dtype=jnp.float32)
    weight = jax.random.normal(k_w, (C_OUT, C_IN, KH, KW), dtype=jnp.float32) * 0.1
    bias = jax.random.normal(k_b, (C_OUT,), dtype=jnp.float32) * 0.1

    out = jax.block_until_ready(conv2d_3x32(x, weight, bias))
    assert out.shape == (B, C_OUT, H, W)

    # Reference: XLA conv + bias (the previous script's reference FORGOT the bias,
    # which is exactly what tripped its 0.2 max-error assert).
    ref = jax.lax.conv_general_dilated(
        x, weight, window_strides=(1, 1), padding=((1, 1), (1, 1)),
        dimension_numbers=("NCHW", "OIHW", "NCHW"),
        precision=jax.lax.Precision.HIGHEST) + bias.reshape(1, C_OUT, 1, 1)

    max_err = float(jnp.max(jnp.abs(out - ref)))
    # 1e-2 leaves headroom for the MXU's bf16-pass f32 matmul while still catching
    # any real layout/ordering bug (those would show up as O(0.1+) errors).
    assert max_err < 1e-2, max_err

    print("KERNEL_OK")
</pallas_src>

<mosaic_0001>
module attributes {stable_mosaic.version = 11 : i64} {
  func.func @kernel(%arg0: i32, %arg1: memref<32x32xf32, #tpu.memory_space<vmem>>, %arg2: memref<32x1xf32, #tpu.memory_space<vmem>>, %arg3: memref<1x3x384xf32, #tpu.memory_space<vmem>>, %arg4: memref<1x32x256xf32, #tpu.memory_space<vmem>>) attributes {dimension_semantics = [#tpu.dimension_semantics<parallel>], iteration_bounds = array<i64: 2>, scalar_prefetch = 0 : i64, scratch_operands = 0 : i64, tpu.core_type = #tpu.core_type<tc>, window_params = [{pipeline_mode = #tpu.pipeline_mode<synchronous>, transform_indices = @transform_0, window_bounds = array<i64: 32, 32>}, {pipeline_mode = #tpu.pipeline_mode<synchronous>, transform_indices = @transform_1, window_bounds = array<i64: 32, 1>}, {transform_indices = @transform_2, window_bounds = array<i64: 1, 3, 384>}, {transform_indices = @transform_3, window_bounds = array<i64: 1, 32, 256>}]} {
    %c0 = arith.constant 0 : index
    %c0_0 = arith.constant 0 : index
    %c0_1 = arith.constant 0 : index
    %0 = vector.load %arg3[%c0, %c0_0, %c0_1] : memref<1x3x384xf32, #tpu.memory_space<vmem>>, vector<1x3x384xf32>
    %1 = vector.shape_cast %0 : vector<1x3x384xf32> to vector<3x384xf32>
    %2 = vector.extract_strided_slice %1 {offsets = [0, 0], sizes = [3, 288], strides = [1, 1]} : vector<3x384xf32> to vector<3x288xf32>
    %3 = vector.extract_strided_slice %1 {offsets = [0, 1], sizes = [3, 288], strides = [1, 1]} : vector<3x384xf32> to vector<3x288xf32>
    %4 = vector.extract_strided_slice %1 {offsets = [0, 2], sizes = [3, 288], strides = [1, 1]} : vector<3x384xf32> to vector<3x288xf32>
    %5 = vector.extract_strided_slice %1 {offsets = [0, 18], sizes = [3, 288], strides = [1, 1]} : vector<3x384xf32> to vector<3x288xf32>
    %6 = vector.extract_strided_slice %1 {offsets = [0, 19], sizes = [3, 288], strides = [1, 1]} : vector<3x384xf32> to vector<3x288xf32>
    %7 = vector.extract_strided_slice %1 {offsets = [0, 20], sizes = [3, 288], strides = [1, 1]} : vector<3x384xf32> to vector<3x288xf32>
    %8 = vector.extract_strided_slice %1 {offsets = [0, 36], sizes = [3, 288], strides = [1, 1]} : vector<3x384xf32> to vector<3x288xf32>
    %9 = vector.extract_strided_slice %1 {offsets = [0, 37], sizes = [3, 288], strides = [1, 1]} : vector<3x384xf32> to vector<3x288xf32>
    %10 = vector.extract_strided_slice %1 {offsets = [0, 38], sizes = [3, 288], strides = [1, 1]} : vector<3x384xf32> to vector<3x288xf32>
    %cst = arith.constant 0.000000e+00 : f32
    %11 = vector.broadcast %cst : f32 to vector<5x288xf32>
    %12 = tpu.concatenate %2, %3, %4, %5, %6, %7, %8, %9, %10, %11 in 0 : vector<3x288xf32>, vector<3x288xf32>, vector<3x288xf32>, vector<3x288xf32>, vector<3x288xf32>, vector<3x288xf32>, vector<3x288xf32>, vector<3x288xf32>, vector<3x288xf32>, vector<5x288xf32> -> vector<32x288xf32>
    %c0_2 = arith.constant 0 : index
    %c0_3 = arith.constant 0 : index
    %13 = vector.load %arg1[%c0_2, %c0_3] : memref<32x32xf32, #tpu.memory_space<vmem>>, vector<32x32xf32>
    %cst_4 = arith.constant dense<0.000000e+00> : vector<32x288xf32>
    %14 = tpu.matmul %13, %12, %cst_4 {dimension_numbers = #tpu.dot_dimension_numbers<[1], [0], [0], [1], [0, 0, 1, 1], [], []>} : vector<32x32xf32>, vector<32x288xf32>, vector<32x288xf32> -> vector<32x288xf32>
    %c0_5 = arith.constant 0 : index
    %c0_6 = arith.constant 0 : index
    %15 = vector.load %arg2[%c0_5, %c0_6] : memref<32x1xf32, #tpu.memory_space<vmem>>, vector<32x1xf32>
    %16 = vector.broadcast %15 : vector<32x1xf32> to vector<32x288xf32>
    %17 = arith.addf %14, %16 : vector<32x288xf32>
    %18 = vector.extract_strided_slice %17 {offsets = [0, 0], sizes = [32, 16], strides = [1, 1]} : vector<32x288xf32> to vector<32x16xf32>
    %c0_7 = arith.constant 0 : index
    %c0_8 = arith.constant 0 : index
    %c0_9 = arith.constant 0 : index
    %19 = vector.load %arg4[%c0_7, %c0_8, %c0_9] : memref<1x32x256xf32, #tpu.memory_space<vmem>>, vector<1x32x16xf32>
    %20 = vector.shape_cast %19 : vector<1x32x16xf32> to vector<32x16xf32>
    %21 = vector.shape_cast %18 : vector<32x16xf32> to vector<1x32x16xf32>
    tpu.vector_store %arg4[%c0_7, %c0_8, %c0_9], %21 {strides = array<i32>} : memref<1x32x256xf32, #tpu.memory_space<vmem>>, vector<1x32x16xf32>,
    %22 = vector.extract_strided_slice %17 {offsets = [0, 18], sizes = [32, 16], strides = [1, 1]} : vector<32x288xf32> to vector<32x16xf32>
    %c0_10 = arith.constant 0 : index
    %c0_11 = arith.constant 0 : index
    %c16 = arith.constant 16 : index
    %23 = vector.load %arg4[%c0_10, %c0_11, %c16] : memref<1x32x256xf32, #tpu.memory_space<vmem>>, vector<1x32x16xf32>
    %24 = vector.shape_cast %23 : vector<1x32x16xf32> to vector<32x16xf32>
    %25 = vector.shape_cast %22 : vector<32x16xf32> to vector<1x32x16xf32>
    tpu.vector_store %arg4[%c0_10, %c0_11, %c16], %25 {strides = array<i32>} : memref<1x32x256xf32, #tpu.memory_space<vmem>>, vector<1x32x16xf32>,
    %26 = vector.extract_strided_slice %17 {offsets = [0, 36], sizes = [32, 16], strides = [1, 1]} : vector<32x288xf32> to vector<32x16xf32>
    %c0_12 = arith.constant 0 : index
    %c0_13 = arith.constant 0 : index
    %c32 = arith.constant 32 : index
    %27 = vector.load %arg4[%c0_12, %c0_13, %c32] : memref<1x32x256xf32, #tpu.memory_space<vmem>>, vector<1x32x16xf32>
    %28 = vector.shape_cast %27 : vector<1x32x16xf32> to vector<32x16xf32>
    %29 = vector.shape_cast %26 : vector<32x16xf32> to vector<1x32x16xf32>
    tpu.vector_store %arg4[%c0_12, %c0_13, %c32], %29 {strides = array<i32>} : memref<1x32x256xf32, #tpu.memory_space<vmem>>, vector<1x32x16xf32>,
    %30 = vector.extract_strided_slice %17 {offsets = [0, 54], sizes = [32, 16], strides = [1, 1]} : vector<32x288xf32> to vector<32x16xf32>
    %c0_14 = arith.constant 0 : index
    %c0_15 = arith.constant 0 : index
    %c48 = arith.constant 48 : index
    %31 = vector.load %arg4[%c0_14, %c0_15, %c48] : memref<1x32x256xf32, #tpu.memory_space<vmem>>, vector<1x32x16xf32>
    %32 = vector.shape_cast %31 : vector<1x32x16xf32> to vector<32x16xf32>
    %33 = vector.shape_cast %30 : vector<32x16xf32> to vector<1x32x16xf32>
    tpu.vector_store %arg4[%c0_14, %c0_15, %c48], %33 {strides = array<i32>} : memref<1x32x256xf32, #tpu.memory_space<vmem>>, vector<1x32x16xf32>,
    %34 = vector.extract_strided_slice %17 {offsets = [0, 72], sizes = [32, 16], strides = [1, 1]} : vector<32x288xf32> to vector<32x16xf32>
    %c0_16 = arith.constant 0 : index
    %c0_17 = arith.constant 0 : index
    %c64 = arith.constant 64 : index
    %35 = vector.load %arg4[%c0_16, %c0_17, %c64] : memref<1x32x256xf32, #tpu.memory_space<vmem>>, vector<1x32x16xf32>
    %36 = vector.shape_cast %35 : vector<1x32x16xf32> to vector<32x16xf32>
    %37 = vector.shape_cast %34 : vector<32x16xf32> to vector<1x32x16xf32>
    tpu.vector_store %arg4[%c0_16, %c0_17, %c64], %37 {strides = array<i32>} : memref<1x32x256xf32, #tpu.memory_space<vmem>>, vector<1x32x16xf32>,
    %38 = vector.extract_strided_slice %17 {offsets = [0, 90], sizes = [32, 16], strides = [1, 1]} : vector<32x288xf32> to vector<32x16xf32>
    %c0_18 = arith.constant 0 : index
    %c0_19 = arith.constant 0 : index
    %c80 = arith.constant 80 : index
    %39 = vector.load %arg4[%c0_18, %c0_19, %c80] : memref<1x32x256xf32, #tpu.memory_space<vmem>>, vector<1x32x16xf32>
    %40 = vector.shape_cast %39 : vector<1x32x16xf32> to vector<32x16xf32>
    %41 = vector.shape_cast %38 : vector<32x16xf32> to vector<1x32x16xf32>
    tpu.vector_store %arg4[%c0_18, %c0_19, %c80], %41 {strides = array<i32>} : memref<1x32x256xf32, #tpu.memory_space<vmem>>, vector<1x32x16xf32>,
    %42 = vector.extract_strided_slice %17 {offsets = [0, 108], sizes = [32, 16], strides = [1, 1]} : vector<32x288xf32> to vector<32x16xf32>
    %c0_20 = arith.constant 0 : index
    %c0_21 = arith.constant 0 : index
    %c96 = arith.constant 96 : index
    %43 = vector.load %arg4[%c0_20, %c0_21, %c96] : memref<1x32x256xf32, #tpu.memory_space<vmem>>, vector<1x32x16xf32>
    %44 = vector.shape_cast %43 : vector<1x32x16xf32> to vector<32x16xf32>
    %45 = vector.shape_cast %42 : vector<32x16xf32> to vector<1x32x16xf32>
    tpu.vector_store %arg4[%c0_20, %c0_21, %c96], %45 {strides = array<i32>} : memref<1x32x256xf32, #tpu.memory_space<vmem>>, vector<1x32x16xf32>,
    %46 = vector.extract_strided_slice %17 {offsets = [0, 126], sizes = [32, 16], strides = [1, 1]} : vector<32x288xf32> to vector<32x16xf32>
    %c0_22 = arith.constant 0 : index
    %c0_23 = arith.constant 0 : index
    %c112 = arith.constant 112 : index
    %47 = vector.load %arg4[%c0_22, %c0_23, %c112] : memref<1x32x256xf32, #tpu.memory_space<vmem>>, vector<1x32x16xf32>
    %48 = vector.shape_cast %47 : vector<1x32x16xf32> to vector<32x16xf32>
    %49 = vector.shape_cast %46 : vector<32x16xf32> to vector<1x32x16xf32>
    tpu.vector_store %arg4[%c0_22, %c0_23, %c112], %49 {strides = array<i32>} : memref<1x32x256xf32, #tpu.memory_space<vmem>>, vector<1x32x16xf32>,
    %50 = vector.extract_strided_slice %17 {offsets = [0, 144], sizes = [32, 16], strides = [1, 1]} : vector<32x288xf32> to vector<32x16xf32>
    %c0_24 = arith.constant 0 : index
    %c0_25 = arith.constant 0 : index
    %c128 = arith.constant 128 : index
    %51 = vector.load %arg4[%c0_24, %c0_25, %c128] : memref<1x32x256xf32, #tpu.memory_space<vmem>>, vector<1x32x16xf32>
    %52 = vector.shape_cast %51 : vector<1x32x16xf32> to vector<32x16xf32>
    %53 = vector.shape_cast %50 : vector<32x16xf32> to vector<1x32x16xf32>
    tpu.vector_store %arg4[%c0_24, %c0_25, %c128], %53 {strides = array<i32>} : memref<1x32x256xf32, #tpu.memory_space<vmem>>, vector<1x32x16xf32>,
    %54 = vector.extract_strided_slice %17 {offsets = [0, 162], sizes = [32, 16], strides = [1, 1]} : vector<32x288xf32> to vector<32x16xf32>
    %c0_26 = arith.constant 0 : index
    %c0_27 = arith.constant 0 : index
    %c144 = arith.constant 144 : index
    %55 = vector.load %arg4[%c0_26, %c0_27, %c144] : memref<1x32x256xf32, #tpu.memory_space<vmem>>, vector<1x32x16xf32>
    %56 = vector.shape_cast %55 : vector<1x32x16xf32> to vector<32x16xf32>
    %57 = vector.shape_cast %54 : vector<32x16xf32> to vector<1x32x16xf32>
    tpu.vector_store %arg4[%c0_26, %c0_27, %c144], %57 {strides = array<i32>} : memref<1x32x256xf32, #tpu.memory_space<vmem>>, vector<1x32x16xf32>,
    %58 = vector.extract_strided_slice %17 {offsets = [0, 180], sizes = [32, 16], strides = [1, 1]} : vector<32x288xf32> to vector<32x16xf32>
    %c0_28 = arith.constant 0 : index
    %c0_29 = arith.constant 0 : index
    %c160 = arith.constant 160 : index
    %59 = vector.load %arg4[%c0_28, %c0_29, %c160] : memref<1x32x256xf32, #tpu.memory_space<vmem>>, vector<1x32x16xf32>
    %60 = vector.shape_cast %59 : vector<1x32x16xf32> to vector<32x16xf32>
    %61 = vector.shape_cast %58 : vector<32x16xf32> to vector<1x32x16xf32>
    tpu.vector_store %arg4[%c0_28, %c0_29, %c160], %61 {strides = array<i32>} : memref<1x32x256xf32, #tpu.memory_space<vmem>>, vector<1x32x16xf32>,
    %62 = vector.extract_strided_slice %17 {offsets = [0, 198], sizes = [32, 16], strides = [1, 1]} : vector<32x288xf32> to vector<32x16xf32>
    %c0_30 = arith.constant 0 : index
    %c0_31 = arith.constant 0 : index
    %c176 = arith.constant 176 : index
    %63 = vector.load %arg4[%c0_30, %c0_31, %c176] : memref<1x32x256xf32, #tpu.memory_space<vmem>>, vector<1x32x16xf32>
    %64 = vector.shape_cast %63 : vector<1x32x16xf32> to vector<32x16xf32>
    %65 = vector.shape_cast %62 : vector<32x16xf32> to vector<1x32x16xf32>
    tpu.vector_store %arg4[%c0_30, %c0_31, %c176], %65 {strides = array<i32>} : memref<1x32x256xf32, #tpu.memory_space<vmem>>, vector<1x32x16xf32>,
    %66 = vector.extract_strided_slice %17 {offsets = [0, 216], sizes = [32, 16], strides = [1, 1]} : vector<32x288xf32> to vector<32x16xf32>
    %c0_32 = arith.constant 0 : index
    %c0_33 = arith.constant 0 : index
    %c192 = arith.constant 192 : index
    %67 = vector.load %arg4[%c0_32, %c0_33, %c192] : memref<1x32x256xf32, #tpu.memory_space<vmem>>, vector<1x32x16xf32>
    %68 = vector.shape_cast %67 : vector<1x32x16xf32> to vector<32x16xf32>
    %69 = vector.shape_cast %66 : vector<32x16xf32> to vector<1x32x16xf32>
    tpu.vector_store %arg4[%c0_32, %c0_33, %c192], %69 {strides = array<i32>} : memref<1x32x256xf32, #tpu.memory_space<vmem>>, vector<1x32x16xf32>,
    %70 = vector.extract_strided_slice %17 {offsets = [0, 234], sizes = [32, 16], strides = [1, 1]} : vector<32x288xf32> to vector<32x16xf32>
    %c0_34 = arith.constant 0 : index
    %c0_35 = arith.constant 0 : index
    %c208 = arith.constant 208 : index
    %71 = vector.load %arg4[%c0_34, %c0_35, %c208] : memref<1x32x256xf32, #tpu.memory_space<vmem>>, vector<1x32x16xf32>
    %72 = vector.shape_cast %71 : vector<1x32x16xf32> to vector<32x16xf32>
    %73 = vector.shape_cast %70 : vector<32x16xf32> to vector<1x32x16xf32>
    tpu.vector_store %arg4[%c0_34, %c0_35, %c208], %73 {strides = array<i32>} : memref<1x32x256xf32, #tpu.memory_space<vmem>>, vector<1x32x16xf32>,
    %74 = vector.extract_strided_slice %17 {offsets = [0, 252], sizes = [32, 16], strides = [1, 1]} : vector<32x288xf32> to vector<32x16xf32>
    %c0_36 = arith.constant 0 : index
    %c0_37 = arith.constant 0 : index
    %c224 = arith.constant 224 : index
    %75 = vector.load %arg4[%c0_36, %c0_37, %c224] : memref<1x32x256xf32, #tpu.memory_space<vmem>>, vector<1x32x16xf32>
    %76 = vector.shape_cast %75 : vector<1x32x16xf32> to vector<32x16xf32>
    %77 = vector.shape_cast %74 : vector<32x16xf32> to vector<1x32x16xf32>
    tpu.vector_store %arg4[%c0_36, %c0_37, %c224], %77 {strides = array<i32>} : memref<1x32x256xf32, #tpu.memory_space<vmem>>, vector<1x32x16xf32>,
    %78 = vector.extract_strided_slice %17 {offsets = [0, 270], sizes = [32, 16], strides = [1, 1]} : vector<32x288xf32> to vector<32x16xf32>
    %c0_38 = arith.constant 0 : index
    %c0_39 = arith.constant 0 : index
    %c240 = arith.constant 240 : index
    %79 = vector.load %arg4[%c0_38, %c0_39, %c240] : memref<1x32x256xf32, #tpu.memory_space<vmem>>, vector<1x32x16xf32>
    %80 = vector.shape_cast %79 : vector<1x32x16xf32> to vector<32x16xf32>
    %81 = vector.shape_cast %78 : vector<32x16xf32> to vector<1x32x16xf32>
    tpu.vector_store %arg4[%c0_38, %c0_39, %c240], %81 {strides = array<i32>} : memref<1x32x256xf32, #tpu.memory_space<vmem>>, vector<1x32x16xf32>,
    return
  }
  func.func @transform_0(%arg0: i32) -> (i32, i32) {
    %c0_i32 = arith.constant 0 : i32
    %c0_i32_0 = arith.constant 0 : i32
    %c0_i32_1 = arith.constant 0 : i32
    return %c0_i32, %c0_i32_0 : i32, i32
  }
  func.func @transform_1(%arg0: i32) -> (i32, i32) {
    %c0_i32 = arith.constant 0 : i32
    %c0_i32_0 = arith.constant 0 : i32
    %c0_i32_1 = arith.constant 0 : i32
    return %c0_i32, %c0_i32_0 : i32, i32
  }
  func.func @transform_2(%arg0: i32) -> (i32, i32, i32) {
    %c0_i32 = arith.constant 0 : i32
    %c0_i32_0 = arith.constant 0 : i32
    %c0_i32_1 = arith.constant 0 : i32
    return %arg0, %c0_i32, %c0_i32_0 : i32, i32, i32
  }
  func.func @transform_3(%arg0: i32) -> (i32, i32, i32) {
    %c0_i32 = arith.constant 0 : i32
    %c0_i32_0 = arith.constant 0 : i32
    %c0_i32_1 = arith.constant 0 : i32
    return %arg0, %c0_i32, %c0_i32_0 : i32, i32, i32
  }
}

</mosaic_0001>

<llo_original>
// kernel: conv2d_3x32.1
$region0: #{conv2d_3x32.1}
  #allocation0 [shape = 'u32[]', space=smem, size = 0x4, offset = 0x4, fixed_abs, tag = 'smem constant byte address 0x4 - core index']
  #allocation1 [shape = 'u32[144,128]{1,0:T(1,128)}', space=vmem, size = 0x12000, scoped, tag = 'internal scratch']
  %s0 = inlined_call_operand.vmem [shape: f32[32,32], index: 0, kind: input, shape index: {}]
  %s1 = inlined_call_operand.vmem [shape: f32[32,1], index: 1, kind: input, shape index: {}]
  %s2 = inlined_call_operand.vmem [shape: f32[2,3,384], index: 2, kind: input, shape index: {}]
  %s3 = inlined_call_operand.vmem [shape: f32[2,32,256], index: 3, kind: output, shape index: {}]
  %s4 = sld [smem:[#allocation0]]
  $region45: #{conv2d_3x32.1} parent=0
    _
  %s6 = ssub.s32 1, %s4
  %s7 = scalar_select 0, %s6, %s4
  loop: start=0, step=1, limit=4
  $region2: #{conv2d_3x32.1} parent=0 // loop_pre_header
    _
  $region3: #{conv2d_3x32.1} parent=0 // loop_header
    %s9 = sphi 0, %s13
    %p10 = scmp.ge.s32.totalorder %s9, 4
    %s17 = sphi 0, %s17
    %s19 = sphi 0, %s17
    %s20 = sphi 0, %s19
    %s34 = sphi 0, %s20
    %s38 = sphi 0, %s38
    %s40 = sphi 0, %s38
    %s41 = sphi 0, %s40
    %s55 = sphi 0, %s41
    %s61 = sphi 0, %s63
    %s64 = sphi 0, %s61
    %s65 = sphi 0, %s64
    %s81 = sphi 0, %s65
    %s87 = sphi 0, %s89
    %s90 = sphi 0, %s87
    %s91 = sphi 0, %s90
    %s107 = sphi 0, %s91
  $region4: #{conv2d_3x32.1} parent=0 // loop_header_branch
    %12 = sbr.rel (%p10) target = $region8
  $region5: #{conv2d_3x32.1} parent=0 // loop_body
    %s14 = ssub.s32 %s9, 1
    %s15 = ssub.s32 %s9, 2
    %s16 = sadd.s32 %s9, 1
    %s18 = sadd.s32 %s17, 1
    %p21 = scmp.eq.s32.totalorder %s9, 1
    %p22 = scmp.ne.s32.totalorder %s17, %s19
    %p23 = scmp.eq.s32.totalorder %s9, 0
    %p24 = por %p22, %p23
    %p25 = scmp.ne.s32.totalorder %s17, %s19
    %p26 = scmp.eq.s32.totalorder %s14, 1
    %p27 = por %p25, %p26
    %p28 = scmp.ne.s32.totalorder %s19, %s20
    %p29 = scmp.eq.s32.totalorder %s14, 0
    %p30 = por %p28, %p29
    %p31 = scmp.ne.s32.totalorder %s19, %s20
    %p32 = scmp.eq.s32.totalorder %s15, 1
    %p33 = por %p31, %p32
    %p35 = scmp.ne.s32.totalorder %s20, %s34
    %p36 = scmp.eq.s32.totalorder %s15, 0
    %p37 = por %p35, %p36
    %s39 = sadd.s32 %s38, 1
    %p42 = scmp.eq.s32.totalorder %s9, 1
    %p43 = scmp.ne.s32.totalorder %s38, %s40
    %p44 = scmp.eq.s32.totalorder %s9, 0
    %p45 = por %p43, %p44
    %p46 = scmp.ne.s32.totalorder %s38, %s40
    %p47 = scmp.eq.s32.totalorder %s14, 1
    %p48 = por %p46, %p47
    %p49 = scmp.ne.s32.totalorder %s40, %s41
    %p50 = scmp.eq.s32.totalorder %s14, 0
    %p51 = por %p49, %p50
    %p52 = scmp.ne.s32.totalorder %s40, %s41
    %p53 = scmp.eq.s32.totalorder %s15, 1
    %p54 = por %p52, %p53
    %p56 = scmp.ne.s32.totalorder %s41, %s55
    %p57 = scmp.eq.s32.totalorder %s15, 0
    %p58 = por %p56, %p57
    %s59 = ssub.s32 %s9, %s16
    %p60 = scmp.eq.s32.totalorder %s59, 0
    %s62 = sadd.s32 %s61, 1
    %s63 = scalar_select %p60, %s61, %s62
    %p66 = pneg %p60
    %p67 = scmp.eq.s32.totalorder %s9, 1
    %p68 = por %p66, %p67
    %p69 = scmp.ne.s32.totalorder %s61, %s64
    %p70 = scmp.eq.s32.totalorder %s9, 0
    %p71 = por %p69, %p70
    %p72 = scmp.ne.s32.totalorder %s61, %s64
    %p73 = scmp.eq.s32.totalorder %s14, 1
    %p74 = por %p72, %p73
    %p75 = scmp.ne.s32.totalorder %s64, %s65
    %p76 = scmp.eq.s32.totalorder %s14, 0
    %p77 = por %p75, %p76
    %p78 = scmp.ne.s32.totalorder %s64, %s65
    %p79 = scmp.eq.s32.totalorder %s15, 1
    %p80 = por %p78, %p79
    %p82 = scmp.ne.s32.totalorder %s65, %s81
    %p83 = scmp.eq.s32.totalorder %s15, 0
    %p84 = por %p82, %p83
    %s85 = ssub.s32 %s9, %s16
    %p86 = scmp.eq.s32.totalorder %s85, 0
    %s88 = sadd.s32 %s87, 1
    %s89 = scalar_select %p86, %s87, %s88
    %p92 = pneg %p86
    %p93 = scmp.eq.s32.totalorder %s9, 1
    %p94 = por %p92, %p93
    %p95 = scmp.ne.s32.totalorder %s87, %s90
    %p96 = scmp.eq.s32.totalorder %s9, 0
    %p97 = por %p95, %p96
    %p98 = scmp.ne.s32.totalorder %s87, %s90
    %p99 = scmp.eq.s32.totalorder %s14, 1
    %p100 = por %p98, %p99
    %p101 = scmp.ne.s32.totalorder %s90, %s91
    %p102 = scmp.eq.s32.totalorder %s14, 0
    %p103 = por %p101, %p102
    %p104 = scmp.ne.s32.totalorder %s90, %s91
    %p105 = scmp.eq.s32.totalorder %s15, 1
    %p106 = por %p104, %p105
    %p108 = scmp.ne.s32.totalorder %s91, %s107
    %p109 = scmp.eq.s32.totalorder %s15, 0
    %p110 = por %p108, %p109
    %p111 = scmp.le.s32.totalorder 1, %s9
    %p112 = scmp.lt.s32.totalorder %s9, 3
    %p113 = pnand %p111, %p112
    %p114 = pneg %p113
    // Predicated region
    $region9: #{conv2d_3x32.1} parent=5 // pred_check
      _
    $region10: #{conv2d_3x32.1} parent=5 // pred_check_branch
      %116 = sbr.rel (%p113) target = $region12
    $region11: #{conv2d_3x32.1} parent=5 // pred_region
      %s117 = ssub.s32 %s9, 1
      // Predicated region
      $region13: #{conv2d_3x32.1} parent=11 // pred_check
        %p118 = pneg %p30
      $region14: #{conv2d_3x32.1} parent=11 // pred_check_branch
        %120 = sbr.rel (%p118) target = $region16
      $region15: #{conv2d_3x32.1} parent=11 // pred_region
        _
      $region16: #{conv2d_3x32.1} parent=11 // pred_fallthru
        _
      // Predicated region
      $region17: #{conv2d_3x32.1} parent=11 // pred_check
        %p121 = pneg %p51
      $region18: #{conv2d_3x32.1} parent=11 // pred_check_branch
        %123 = sbr.rel (%p121) target = $region20
      $region19: #{conv2d_3x32.1} parent=11 // pred_region
        _
      $region20: #{conv2d_3x32.1} parent=11 // pred_fallthru
        _
    $region12: #{conv2d_3x32.1} parent=5 // pred_fallthru
      _
    %p124 = scmp.lt.s32.totalorder %s9, 2
    // Predicated region
    $region21: #{conv2d_3x32.1} parent=5 // pred_check
      %p125 = pneg %p124
    $region22: #{conv2d_3x32.1} parent=5 // pred_check_branch
      %127 = sbr.rel (%p125) target = $region24
    $region23: #{conv2d_3x32.1} parent=5 // pred_region
      // Predicated region
      $region25: #{conv2d_3x32.1} parent=23 // pred_check
        %p128 = pneg %p71
      $region26: #{conv2d_3x32.1} parent=23 // pred_check_branch
        %130 = sbr.rel (%p128) target = $region28
      $region27: #{conv2d_3x32.1} parent=23 // pred_region
        %p131 = scmp.lt.s32.totalorder %s9, 1
        %s132 = scalar_select %p131, %s9, 1
        %s133 = smul.addr %s132, 3
        %s134 = smul.addr %s133, 4
        %s135 = scalar_lea.vmem %s2, %s134
      $region28: #{conv2d_3x32.1} parent=23 // pred_fallthru
        _
    $region24: #{conv2d_3x32.1} parent=5 // pred_fallthru
      _
    %p136 = scmp.le.s32.totalorder 1, %s9
    %p137 = scmp.lt.s32.totalorder %s9, 3
    %p138 = pnand %p136, %p137
    %p139 = pneg %p138
    // Predicated region
    $region29: #{conv2d_3x32.1} parent=5 // pred_check
      _
    $region30: #{conv2d_3x32.1} parent=5 // pred_check_branch
      %141 = sbr.rel (%p138) target = $region32
    $region31: #{conv2d_3x32.1} parent=5 // pred_region
      %s142 = ssub.s32 %s9, 1
      %p143 = pneg %p30
      %p144 = pneg %p27
      %p145 = pneg %p51
      %p146 = pneg %p48
      %p147 = scmp.lt.s32.totalorder %s14, 1
      %s148 = scalar_select %p147, %s14, 1
      %s149 = smul.addr %s148, 3
      %s150 = smul.addr %s149, 4
      %s151 = scalar_lea.vmem %s2, %s150
      %p152 = pneg %p77
      %p153 = pneg %p74
      %p154 = pneg %p103
      %p155 = pneg %p100
      %p156 = scmp.lt.s32.totalorder %s14, 1
      %s157 = scalar_select %p156, %s14, 1
      %s158 = smul.addr %s157, 8
      %s159 = smul.addr %s158, 8
      %s160 = scalar_lea.vmem %s3, %s159
      %p161 = scmp.lt.s32.totalorder %s14, 1
      %s162 = scalar_select %p161, %s14, 1
      %s163 = smul.addr %s162, 3
      %s164 = smul.addr %s163, 4
      %s165 = scalar_lea.vmem %s2, %s164
      %p166 = scmp.lt.s32.totalorder %s14, 1
      %s167 = scalar_select %p166, %s14, 1
      %s168 = smul.addr %s167, 8
      %s169 = smul.addr %s168, 8
      %s170 = scalar_lea.vmem %s3, %s169
      %v171 = vld [vmem:[%s165] sm:$0x77]
      %v172 = vld [vmem:[%s165 + $0x8] sm:$0x7]
      %v175 = vcombine.high %v171, %v171
      %v177 = vrot.slane %v171, 5
      %v178 = vrot.slane %v175, 5
      %v179 = vrot.slane %v172, 5
      %180 = vrot.lane.b32.xlu0 %v177, 127
      %v181 = vpop.permute.xlu0 %180
      %182 = vrot.lane.b32.xlu0 %v178, 127
      %v183 = vpop.permute.xlu0 %182
      %184 = vrot.lane.b32.xlu0 %v179, 127
      %v185 = vpop.permute.xlu0 %184
      %vm186 = vcmask 1039360
      %v187 = vsel %vm186, %v181, %v183
      %v188 = vsel %vm186, %v183, %v185
      %v192 = vrot.slane %v171, 2
      %v193 = vrot.slane %v175, 2
      %v194 = vrot.slane %v172, 2
      %195 = vrot.lane.b32.xlu0 %v192, 126
      %v196 = vpop.permute.xlu0 %195
      %197 = vrot.lane.b32.xlu0 %v193, 126
      %v198 = vpop.permute.xlu0 %197
      %199 = vrot.lane.b32.xlu0 %v194, 126
      %v200 = vpop.permute.xlu0 %199
      %vm201 = vcmask 1031168
      %v202 = vsel %vm201, %v196, %v198
      %v203 = vsel %vm201, %v198, %v200
      %v207 = vrot.slane %v171, 7
      %v208 = vrot.slane %v175, 7
      %v209 = vrot.slane %v172, 7
      %210 = vrot.lane.b32.xlu0 %v207, 110
      %v211 = vpop.permute.xlu0 %210
      %212 = vrot.lane.b32.xlu0 %v208, 110
      %v213 = vpop.permute.xlu0 %212
      %214 = vrot.lane.b32.xlu0 %v209, 110
      %v215 = vpop.permute.xlu0 %214
      %vm216 = vcmask 900096
      %v217 = vsel %vm216, %v211, %v213
      %v218 = vsel %vm216, %v213, %v215
      %v222 = vcombine.low %v171, %v171
      %v223 = vcombine.low %v172, %v172
      %224 = vrot.lane.b32.xlu0 %v222, 109
      %v225 = vpop.permute.xlu0 %224
      %226 = vrot.lane.b32.xlu0 %v171, 109
      %v227 = vpop.permute.xlu0 %226
      %228 = vrot.lane.b32.xlu0 %v223, 109
      %v229 = vpop.permute.xlu0 %228
      %vm230 = vcmask 891904
      %v231 = vsel %vm230, %v225, %v227
      %v232 = vsel %vm230, %v227, %v229
      %v236 = vrot.slane %v171, 1
      %v237 = vrot.slane %v175, 1
      %v238 = vrot.slane %v172, 1
      %239 = vrot.lane.b32.xlu0 %v236, 108
      %v240 = vpop.permute.xlu0 %239
      %241 = vrot.lane.b32.xlu0 %v237, 108
      %v242 = vpop.permute.xlu0 %241
      %243 = vrot.lane.b32.xlu0 %v238, 108
      %v244 = vpop.permute.xlu0 %243
      %vm245 = vcmask 883712
      %v246 = vsel %vm245, %v240, %v242
      %v247 = vsel %vm245, %v242, %v244
      %v251 = vrot.slane %v171, 6
      %v252 = vrot.slane %v175, 6
      %v253 = vrot.slane %v172, 6
      %254 = vrot.lane.b32.xlu0 %v251, 92
      %v255 = vpop.permute.xlu0 %254
      %256 = vrot.lane.b32.xlu0 %v252, 92
      %v257 = vpop.permute.xlu0 %256
      %258 = vrot.lane.b32.xlu0 %v253, 92
      %v259 = vpop.permute.xlu0 %258
      %vm260 = vcmask 752640
      %v261 = vsel %vm260, %v255, %v257
      %v262 = vsel %vm260, %v257, %v259
      %v266 = vrot.slane %v171, 3
      %v267 = vrot.slane %v175, 3
      %v268 = vrot.slane %v172, 3
      %269 = vrot.lane.b32.xlu0 %v266, 91
      %v270 = vpop.permute.xlu0 %269
      %271 = vrot.lane.b32.xlu0 %v267, 91
      %v272 = vpop.permute.xlu0 %271
      %273 = vrot.lane.b32.xlu0 %v268, 91
      %v274 = vpop.permute.xlu0 %273
      %vm275 = vcmask 744448
      %v276 = vsel %vm275, %v270, %v272
      %v277 = vsel %vm275, %v272, %v274
      %281 = vrot.lane.b32.xlu0 %v171, 90
      %v282 = vpop.permute.xlu0 %281
      %283 = vrot.lane.b32.xlu0 %v175, 90
      %v284 = vpop.permute.xlu0 %283
      %285 = vrot.lane.b32.xlu0 %v172, 90
      %v286 = vpop.permute.xlu0 %285
      %vm287 = vcmask 736256
      %v288 = vsel %vm287, %v282, %v284
      %v289 = vsel %vm287, %v284, %v286
      %vm293 = vcmask 1042432
      %v294 = vsel %vm293, %v171, %v187
      %v295 = vsel %vm293, %v175, %v188
      %v296 = vsel %vm293, %v172, %v185
      %vm297 = vcmask 1045504
      %v298 = vsel %vm297, %v294, %v202
      %v299 = vsel %vm297, %v295, %v203
      %v300 = vsel %vm297, %v296, %v200
      %vm301 = vcmask 1040384
      %v302 = vsel %vm301, %v202, %v217
      %v303 = vsel %vm301, %v203, %v218
      %v304 = vsel %vm301, %v200, %v215
      %vm305 = vcmask 1043456
      %v306 = vsel %vm305, %v302, %v231
      %v307 = vsel %vm305, %v303, %v232
      %v308 = vsel %vm305, %v304, %v229
      %vm309 = vcmask 1046528
      %v310 = vsel %vm309, %v306, %v246
      %v311 = vsel %vm309, %v307, %v247
      %v312 = vsel %vm309, %v308, %v244
      %vm313 = vcmask 1041408
      %v314 = vsel %vm313, %v246, %v261
      %v315 = vsel %vm313, %v247, %v262
      %v316 = vsel %vm313, %v244, %v259
      %vm317 = vcmask 1044480
      %v318 = vsel %vm317, %v314, %v276
      %v319 = vsel %vm317, %v315, %v277
      %v320 = vsel %vm317, %v316, %v274
      %v321 = vsel %vm293, %v288, 0.0
      %v322 = vsel %vm293, %v289, 0.0
      %v323 = vsel %vm293, %v286, 0.0
      %v324 = vld [vmem:[%s0] sm:$0xff]
      %v325 = vld [vmem:[%s0 + $0x8] sm:$0xff]
      %v326 = vld [vmem:[%s0 + $0x10] sm:$0xff]
      %v327 = vld [vmem:[%s0 + $0x18] sm:$0xff]
      %v328 = vld [vmem:[%s1] sm:$0xff]
      %v329 = vld [vmem:[%s1 + $0x8] sm:$0xff]
      %v330 = vld [vmem:[%s1 + $0x10] sm:$0xff]
      %v331 = vld [vmem:[%s1 + $0x18] sm:$0xff]
      %333 = vset.pattern.permute.xlu0 0
      %334 = vperm.xlu0 %333, %v328
      %v335 = vpop.permute.xlu0 %334
      %338 = vset.pattern.permute.xlu0 0
      %339 = vperm.xlu0 %338, %v329
      %v340 = vpop.permute.xlu0 %339
      %343 = vset.pattern.permute.xlu0 0
      %344 = vperm.xlu0 %343, %v330
      %v345 = vpop.permute.xlu0 %344
      %348 = vset.pattern.permute.xlu0 0
      %349 = vperm.xlu0 %348, %v331
      %v350 = vpop.permute.xlu0 %349
      %vm352 = vcmask 261120
      %v354 = vsel %vm352, %v324, 0
      %v357 = vsel %vm352, %v325, 0
      %v360 = vsel %vm352, %v326, 0
      %v363 = vsel %vm352, %v327, 0
      %365 = vmatprep.subr.mxu0 %v299
      %366 = vmatpush1.msra.mxu0 %v298
      %367 = vmatprep.subr.mxu0 %v311
      %368 = vmatpush1.msra.mxu0 %v310
      %369 = vmatprep.subr.mxu0 %v319
      %370 = vmatpush1.msra.mxu0 %v318
      %371 = vmatprep.subr.mxu0 %v322
      %372 = vmatpush1.msra.mxu0 %v321
      %373 = vmatprep.subr.mxu0 0.0
      %374 = vmatpush1.msra.mxu0 0.0
      %375 = vmatprep.subr.mxu0 0.0
      %376 = vmatpush1.msra.mxu0 0.0
      %377 = vmatprep.subr.mxu0 0.0
      %378 = vmatpush1.msra.mxu0 0.0
      %379 = vmatprep.subr.mxu0 0.0
      %380 = vmatpush1.msra.mxu0 0.0
      %381 = vmatprep.subr.mxu0 0.0
      %382 = vmatpush1.msra.mxu0 0.0
      %383 = vmatprep.subr.mxu0 0.0
      %384 = vmatpush1.msra.mxu0 0.0
      %385 = vmatprep.subr.mxu0 0.0
      %386 = vmatpush1.msra.mxu0 0.0
      %387 = vmatprep.subr.mxu0 0.0
      %388 = vmatpush1.msra.mxu0 0.0
      %389 = vmatprep.subr.mxu0 0.0
      %390 = vmatpush1.msra.mxu0 0.0
      %391 = vmatprep.subr.mxu0 0.0
      %392 = vmatpush1.msra.mxu0 0.0
      %393 = vmatprep.subr.mxu0 0.0
      %394 = vmatpush1.msra.mxu0 0.0
      %395 = vmatprep.subr.mxu0 0.0
      %396 = vmatpush1.msra.mxu0 0.0
      %397 = vmatprep.subr.mxu0 0.0
      %398 = vmatpush1.msra.mxu0 0.0
      %399 = vmatprep.subr.mxu0 0.0
      %400 = vmatpush1.msra.mxu0 0.0
      %401 = vmatprep.subr.mxu0 0.0
      %402 = vmatpush1.msra.mxu0 0.0
      %403 = vmatprep.subr.mxu0 0.0
      %404 = vmatpush1.msra.mxu0 0.0
      %405 = vmatprep.subr.mxu0 0.0
      %406 = vmatpush1.msra.mxu0 0.0
      %407 = vmatprep.subr.mxu0 0.0
      %408 = vmatpush1.msra.mxu0 0.0
      %409 = vmatprep.subr.mxu0 0.0
      %410 = vmatpush1.msra.mxu0 0.0
      %411 = vmatprep.subr.mxu0 0.0
      %412 = vmatpush1.msra.mxu0 0.0
      %413 = vmatprep.subr.mxu0 0.0
      %414 = vmatpush1.msra.mxu0 0.0
      %415 = vmatprep.subr.mxu0 0.0
      %416 = vmatpush1.msra.mxu0 0.0
      %417 = vmatprep.subr.mxu0 0.0
      %418 = vmatpush1.msra.mxu0 0.0
      %419 = vmatprep.subr.mxu0 0.0
      %420 = vmatpush1.msra.mxu0 0.0
      %421 = vmatprep.subr.mxu0 0.0
      %422 = vmatpush1.msra.mxu0 0.0
      %423 = vmatprep.subr.mxu0 0.0
      %424 = vmatpush1.msra.mxu0 0.0
      %425 = vmatprep.subr.mxu0 0.0
      %426 = vmatpush1.msra.mxu0 0.0
      %427 = vmatprep.subr.mxu0 0.0
      %428 = vmatpush1.msra.mxu0 0.0
      %429 = vmatprep.mubr.f32.mxu0 0.0
      %430 = vmatmul.mubr.f32.gmra.mrb[0].mxu0 %v354
      %v431 = vpop.f32.mrb[0].mxu0
      %v432 = vadd.f32 %v335, %v431
      %v433 = vpop.f32.mrb[0].mxu0
      %v434 = vadd.f32 %v335, %v433
      %435 = vmatprep.mubr.f32.mxu0 0.0
      %436 = vmatmul.mubr.f32.gmra.mrb[0].mxu0 %v357
      %v437 = vpop.f32.mrb[0].mxu0
      %v438 = vadd.f32 %v340, %v437
      %v439 = vpop.f32.mrb[0].mxu0
      %v440 = vadd.f32 %v340, %v439
      %441 = vmatprep.mubr.f32.mxu0 0.0
      %442 = vmatmul.mubr.f32.gmra.mrb[0].mxu0 %v360
      %v443 = vpop.f32.mrb[0].mxu0
      %v444 = vadd.f32 %v345, %v443
      %v445 = vpop.f32.mrb[0].mxu0
      %v446 = vadd.f32 %v345, %v445
      %447 = vmatprep.mubr.f32.mxu0 0.0
      %448 = vmatmul.mubr.f32.gmra.mrb[0].mxu0 %v363
      %v449 = vpop.f32.mrb[0].mxu0
      %v450 = vadd.f32 %v350, %v449
      %v451 = vpop.f32.mrb[0].mxu0
      %v452 = vadd.f32 %v350, %v451
      %453 = vdwg.mxu0
      %454 = vmatprep.subr.mxu0 0.0
      %455 = vmatpush1.msra.mxu0 %v300
      %456 = vmatprep.subr.mxu0 0.0
      %457 = vmatpush1.msra.mxu0 %v312
      %458 = vmatprep.subr.mxu0 0.0
      %459 = vmatpush1.msra.mxu0 %v320
      %460 = vmatprep.subr.mxu0 0.0
      %461 = vmatpush1.msra.mxu0 %v323
      %462 = vmatprep.subr.mxu0 0.0
      %463 = vmatpush1.msra.mxu0 0.0
      %464 = vmatprep.subr.mxu0 0.0
      %465 = vmatpush1.msra.mxu0 0.0
      %466 = vmatprep.subr.mxu0 0.0
      %467 = vmatpush1.msra.mxu0 0.0
      %468 = vmatprep.subr.mxu0 0.0
      %469 = vmatpush1.msra.mxu0 0.0
      %470 = vmatprep.subr.mxu0 0.0
      %471 = vmatpush1.msra.mxu0 0.0
      %472 = vmatprep.subr.mxu0 0.0
      %473 = vmatpush1.msra.mxu0 0.0
      %474 = vmatprep.subr.mxu0 0.0
      %475 = vmatpush1.msra.mxu0 0.0
      %476 = vmatprep.subr.mxu0 0.0
      %477 = vmatpush1.msra.mxu0 0.0
      %478 = vmatprep.subr.mxu0 0.0
      %479 = vmatpush1.msra.mxu0 0.0
      %480 = vmatprep.subr.mxu0 0.0
      %481 = vmatpush1.msra.mxu0 0.0
      %482 = vmatprep.subr.mxu0 0.0
      %483 = vmatpush1.msra.mxu0 0.0
      %484 = vmatprep.subr.mxu0 0.0
      %485 = vmatpush1.msra.mxu0 0.0
      %486 = vmatprep.subr.mxu0 0.0
      %487 = vmatpush1.msra.mxu0 0.0
      %488 = vmatprep.subr.mxu0 0.0
      %489 = vmatpush1.msra.mxu0 0.0
      %490 = vmatprep.subr.mxu0 0.0
      %491 = vmatpush1.msra.mxu0 0.0
      %492 = vmatprep.subr.mxu0 0.0
      %493 = vmatpush1.msra.mxu0 0.0
      %494 = vmatprep.subr.mxu0 0.0
      %495 = vmatpush1.msra.mxu0 0.0
      %496 = vmatprep.subr.mxu0 0.0
      %497 = vmatpush1.msra.mxu0 0.0
      %498 = vmatprep.subr.mxu0 0.0
      %499 = vmatpush1.msra.mxu0 0.0
      %500 = vmatprep.subr.mxu0 0.0
      %501 = vmatpush1.msra.mxu0 0.0
      %502 = vmatprep.subr.mxu0 0.0
      %503 = vmatpush1.msra.mxu0 0.0
      %504 = vmatprep.subr.mxu0 0.0
      %505 = vmatpush1.msra.mxu0 0.0
      %506 = vmatprep.subr.mxu0 0.0
      %507 = vmatpush1.msra.mxu0 0.0
      %508 = vmatprep.subr.mxu0 0.0
      %509 = vmatpush1.msra.mxu0 0.0
      %510 = vmatprep.subr.mxu0 0.0
      %511 = vmatpush1.msra.mxu0 0.0
      %512 = vmatprep.subr.mxu0 0.0
      %513 = vmatpush1.msra.mxu0 0.0
      %514 = vmatprep.subr.mxu0 0.0
      %515 = vmatpush1.msra.mxu0 0.0
      %516 = vmatprep.subr.mxu0 0.0
      %517 = vmatpush1.msra.mxu0 0.0
      %518 = vmatprep.mubr.f32.mxu0 0.0
      %519 = vmatmul.mubr.f32.gmra.mrb[0].mxu0 %v354
      %v520 = vpop.f32.mrb[0].mxu0
      %v521 = vadd.f32 %v335, %v520
      %v522 = vpop.f32.mrb[0].mxu0
      %523 = vmatprep.mubr.f32.mxu0 0.0
      %524 = vmatmul.mubr.f32.gmra.mrb[0].mxu0 %v357
      %v525 = vpop.f32.mrb[0].mxu0
      %v526 = vadd.f32 %v340, %v525
      %v527 = vpop.f32.mrb[0].mxu0
      %528 = vmatprep.mubr.f32.mxu0 0.0
      %529 = vmatmul.mubr.f32.gmra.mrb[0].mxu0 %v360
      %v530 = vpop.f32.mrb[0].mxu0
      %v531 = vadd.f32 %v345, %v530
      %v532 = vpop.f32.mrb[0].mxu0
      %533 = vmatprep.mubr.f32.mxu0 0.0
      %534 = vmatmul.mubr.f32.gmra.mrb[0].mxu0 %v363
      %v535 = vpop.f32.mrb[0].mxu0
      %v536 = vadd.f32 %v350, %v535
      %v537 = vpop.f32.mrb[0].mxu0
      %538 = vdwg.mxu0
      %vm539 = vcmask 130048
      %540 = vst.msk [vmem:[%s170] sm:$0xff] %vm539, %v432
      %541 = vst.msk [vmem:[%s170 + $0x10] sm:$0xff] %vm539, %v438
      %542 = vst.msk [vmem:[%s170 + $0x20] sm:$0xff] %vm539, %v444
      %543 = vst.msk [vmem:[%s170 + $0x30] sm:$0xff] %vm539, %v450
      %548 = vrot.lane.b32.xlu0 %v432, 126
      %v549 = vpop.permute.xlu0 %548
      %550 = vrot.lane.b32.xlu0 %v438, 126
      %v551 = vpop.permute.xlu0 %550
      %552 = vrot.lane.b32.xlu0 %v444, 126
      %v553 = vpop.permute.xlu0 %552
      %554 = vrot.lane.b32.xlu0 %v450, 126
      %v555 = vpop.permute.xlu0 %554
      %vm560 = vcmask 261248
      %561 = vst.msk [vmem:[%s170] sm:$0xff] %vm560, %v549
      %562 = vst.msk [vmem:[%s170 + $0x10] sm:$0xff] %vm560, %v551
      %563 = vst.msk [vmem:[%s170 + $0x20] sm:$0xff] %vm560, %v553
      %564 = vst.msk [vmem:[%s170 + $0x30] sm:$0xff] %vm560, %v555
      %565 = vrot.lane.b32.xlu0 %v432, 124
      %v566 = vpop.permute.xlu0 %565
      %567 = vrot.lane.b32.xlu0 %v438, 124
      %v568 = vpop.permute.xlu0 %567
      %569 = vrot.lane.b32.xlu0 %v444, 124
      %v570 = vpop.permute.xlu0 %569
      %571 = vrot.lane.b32.xlu0 %v450, 124
      %v572 = vpop.permute.xlu0 %571
      %vm577 = vcmask 392448
      %578 = vst.msk [vmem:[%s170] sm:$0xff] %vm577, %v566
      %579 = vst.msk [vmem:[%s170 + $0x10] sm:$0xff] %vm577, %v568
      %580 = vst.msk [vmem:[%s170 + $0x20] sm:$0xff] %vm577, %v570
      %581 = vst.msk [vmem:[%s170 + $0x30] sm:$0xff] %vm577, %v572
      %582 = vrot.lane.b32.xlu0 %v432, 122
      %v583 = vpop.permute.xlu0 %582
      %584 = vrot.lane.b32.xlu0 %v438, 122
      %v585 = vpop.permute.xlu0 %584
      %586 = vrot.lane.b32.xlu0 %v444, 122
      %v587 = vpop.permute.xlu0 %586
      %588 = vrot.lane.b32.xlu0 %v450, 122
      %v589 = vpop.permute.xlu0 %588
      %vm594 = vcmask 523648
      %595 = vst.msk [vmem:[%s170] sm:$0xff] %vm594, %v583
      %596 = vst.msk [vmem:[%s170 + $0x10] sm:$0xff] %vm594, %v585
      %597 = vst.msk [vmem:[%s170 + $0x20] sm:$0xff] %vm594, %v587
      %598 = vst.msk [vmem:[%s170 + $0x30] sm:$0xff] %vm594, %v589
      %599 = vrot.lane.b32.xlu0 %v432, 120
      %v600 = vpop.permute.xlu0 %599
      %601 = vrot.lane.b32.xlu0 %v438, 120
      %v602 = vpop.permute.xlu0 %601
      %603 = vrot.lane.b32.xlu0 %v444, 120
      %v604 = vpop.permute.xlu0 %603
      %605 = vrot.lane.b32.xlu0 %v450, 120
      %v606 = vpop.permute.xlu0 %605
      %vm611 = vcmask 654848
      %612 = vst.msk [vmem:[%s170] sm:$0xff] %vm611, %v600
      %613 = vst.msk [vmem:[%s170 + $0x10] sm:$0xff] %vm611, %v602
      %614 = vst.msk [vmem:[%s170 + $0x20] sm:$0xff] %vm611, %v604
      %615 = vst.msk [vmem:[%s170 + $0x30] sm:$0xff] %vm611, %v606
      %616 = vrot.lane.b32.xlu0 %v432, 118
      %v617 = vpop.permute.xlu0 %616
      %618 = vrot.lane.b32.xlu0 %v438, 118
      %v619 = vpop.permute.xlu0 %618
      %620 = vrot.lane.b32.xlu0 %v444, 118
      %v621 = vpop.permute.xlu0 %620
      %622 = vrot.lane.b32.xlu0 %v450, 118
      %v623 = vpop.permute.xlu0 %622
      %vm628 = vcmask 786048
      %629 = vst.msk [vmem:[%s170] sm:$0xff] %vm628, %v617
      %630 = vst.msk [vmem:[%s170 + $0x10] sm:$0xff] %vm628, %v619
      %631 = vst.msk [vmem:[%s170 + $0x20] sm:$0xff] %vm628, %v621
      %632 = vst.msk [vmem:[%s170 + $0x30] sm:$0xff] %vm628, %v623
      %633 = vrot.lane.b32.xlu0 %v432, 116
      %v634 = vpop.permute.xlu0 %633
      %635 = vrot.lane.b32.xlu0 %v438, 116
      %v636 = vpop.permute.xlu0 %635
      %637 = vrot.lane.b32.xlu0 %v444, 116
      %v638 = vpop.permute.xlu0 %637
      %639 = vrot.lane.b32.xlu0 %v450, 116
      %v640 = vpop.permute.xlu0 %639
      %vm645 = vcmask 917248
      %646 = vst.msk [vmem:[%s170] sm:$0xff] %vm645, %v634
      %647 = vst.msk [vmem:[%s170 + $0x10] sm:$0xff] %vm645, %v636
      %648 = vst.msk [vmem:[%s170 + $0x20] sm:$0xff] %vm645, %v638
      %649 = vst.msk [vmem:[%s170 + $0x30] sm:$0xff] %vm645, %v640
      %654 = vrot.lane.b32.xlu0 %v432, 114
      %v655 = vpop.permute.xlu0 %654
      %656 = vrot.lane.b32.xlu0 %v434, 114
      %v657 = vpop.permute.xlu0 %656
      %658 = vrot.lane.b32.xlu0 %v438, 114
      %v659 = vpop.permute.xlu0 %658
      %660 = vrot.lane.b32.xlu0 %v440, 114
      %v661 = vpop.permute.xlu0 %660
      %662 = vrot.lane.b32.xlu0 %v444, 114
      %v663 = vpop.permute.xlu0 %662
      %664 = vrot.lane.b32.xlu0 %v446, 114
      %v665 = vpop.permute.xlu0 %664
      %666 = vrot.lane.b32.xlu0 %v450, 114
      %v667 = vpop.permute.xlu0 %666
      %668 = vrot.lane.b32.xlu0 %v452, 114
      %v669 = vpop.permute.xlu0 %668
      %vm670 = vcmask 932864
      %v671 = vsel %vm670, %v655, %v657
      %v672 = vsel %vm670, %v659, %v661
      %v673 = vsel %vm670, %v663, %v665
      %v674 = vsel %vm670, %v667, %v669
      %vm679 = vcmask 1048448
      %680 = vst.msk [vmem:[%s170] sm:$0xff] %vm679, %v671
      %681 = vst.msk [vmem:[%s170 + $0x10] sm:$0xff] %vm679, %v672
      %682 = vst.msk [vmem:[%s170 + $0x20] sm:$0xff] %vm679, %v673
      %683 = vst.msk [vmem:[%s170 + $0x30] sm:$0xff] %vm679, %v674
      %684 = vrot.lane.b32.xlu0 %v434, 112
      %v685 = vpop.permute.xlu0 %684
      %686 = vrot.lane.b32.xlu0 %v440, 112
      %v687 = vpop.permute.xlu0 %686
      %688 = vrot.lane.b32.xlu0 %v446, 112
      %v689 = vpop.permute.xlu0 %688
      %690 = vrot.lane.b32.xlu0 %v452, 112
      %v691 = vpop.permute.xlu0 %690
      %696 = vst.msk [vmem:[%s170 + $0x8] sm:$0xff] %vm539, %v685
      %697 = vst.msk [vmem:[%s170 + $0x18] sm:$0xff] %vm539, %v687
      %698 = vst.msk [vmem:[%s170 + $0x28] sm:$0xff] %vm539, %v689
      %699 = vst.msk [vmem:[%s170 + $0x38] sm:$0xff] %vm539, %v691
      %700 = vrot.lane.b32.xlu0 %v434, 110
      %v701 = vpop.permute.xlu0 %700
      %702 = vrot.lane.b32.xlu0 %v440, 110
      %v703 = vpop.permute.xlu0 %702
      %704 = vrot.lane.b32.xlu0 %v446, 110
      %v705 = vpop.permute.xlu0 %704
      %706 = vrot.lane.b32.xlu0 %v452, 110
      %v707 = vpop.permute.xlu0 %706
      %712 = vst.msk [vmem:[%s170 + $0x8] sm:$0xff] %vm560, %v701
      %713 = vst.msk [vmem:[%s170 + $0x18] sm:$0xff] %vm560, %v703
      %714 = vst.msk [vmem:[%s170 + $0x28] sm:$0xff] %vm560, %v705
      %715 = vst.msk [vmem:[%s170 + $0x38] sm:$0xff] %vm560, %v707
      %716 = vrot.lane.b32.xlu0 %v434, 108
      %v717 = vpop.permute.xlu0 %716
      %718 = vrot.lane.b32.xlu0 %v440, 108
      %v719 = vpop.permute.xlu0 %718
      %720 = vrot.lane.b32.xlu0 %v446, 108
      %v721 = vpop.permute.xlu0 %720
      %722 = vrot.lane.b32.xlu0 %v452, 108
      %v723 = vpop.permute.xlu0 %722
      %728 = vst.msk [vmem:[%s170 + $0x8] sm:$0xff] %vm577, %v717
      %729 = vst.msk [vmem:[%s170 + $0x18] sm:$0xff] %vm577, %v719
      %730 = vst.msk [vmem:[%s170 + $0x28] sm:$0xff] %vm577, %v721
      %731 = vst.msk [vmem:[%s170 + $0x38] sm:$0xff] %vm577, %v723
      %732 = vrot.lane.b32.xlu0 %v434, 106
      %v733 = vpop.permute.xlu0 %732
      %734 = vrot.lane.b32.xlu0 %v440, 106
      %v735 = vpop.permute.xlu0 %734
      %736 = vrot.lane.b32.xlu0 %v446, 106
      %v737 = vpop.permute.xlu0 %736
      %738 = vrot.lane.b32.xlu0 %v452, 106
      %v739 = vpop.permute.xlu0 %738
      %744 = vst.msk [vmem:[%s170 + $0x8] sm:$0xff] %vm594, %v733
      %745 = vst.msk [vmem:[%s170 + $0x18] sm:$0xff] %vm594, %v735
      %746 = vst.msk [vmem:[%s170 + $0x28] sm:$0xff] %vm594, %v737
      %747 = vst.msk [vmem:[%s170 + $0x38] sm:$0xff] %vm594, %v739
      %748 = vrot.lane.b32.xlu0 %v434, 104
      %v749 = vpop.permute.xlu0 %748
      %750 = vrot.lane.b32.xlu0 %v440, 104
      %v751 = vpop.permute.xlu0 %750
      %752 = vrot.lane.b32.xlu0 %v446, 104
      %v753 = vpop.permute.xlu0 %752
      %754 = vrot.lane.b32.xlu0 %v452, 104
      %v755 = vpop.permute.xlu0 %754
      %760 = vst.msk [vmem:[%s170 + $0x8] sm:$0xff] %vm611, %v749
      %761 = vst.msk [vmem:[%s170 + $0x18] sm:$0xff] %vm611, %v751
      %762 = vst.msk [vmem:[%s170 + $0x28] sm:$0xff] %vm611, %v753
      %763 = vst.msk [vmem:[%s170 + $0x38] sm:$0xff] %vm611, %v755
      %764 = vrot.lane.b32.xlu0 %v434, 102
      %v765 = vpop.permute.xlu0 %764
      %766 = vrot.lane.b32.xlu0 %v440, 102
      %v767 = vpop.permute.xlu0 %766
      %768 = vrot.lane.b32.xlu0 %v446, 102
      %v769 = vpop.permute.xlu0 %768
      %770 = vrot.lane.b32.xlu0 %v452, 102
      %v771 = vpop.permute.xlu0 %770
      %776 = vst.msk [vmem:[%s170 + $0x8] sm:$0xff] %vm628, %v765
      %777 = vst.msk [vmem:[%s170 + $0x18] sm:$0xff] %vm628, %v767
      %778 = vst.msk [vmem:[%s170 + $0x28] sm:$0xff] %vm628, %v769
      %779 = vst.msk [vmem:[%s170 + $0x38] sm:$0xff] %vm628, %v771
      %784 = vrot.lane.b32.xlu0 %v434, 100
      %v785 = vpop.permute.xlu0 %784
      %786 = vrot.lane.b32.xlu0 %v521, 100
      %v787 = vpop.permute.xlu0 %786
      %788 = vrot.lane.b32.xlu0 %v440, 100
      %v789 = vpop.permute.xlu0 %788
      %790 = vrot.lane.b32.xlu0 %v526, 100
      %v791 = vpop.permute.xlu0 %790
      %792 = vrot.lane.b32.xlu0 %v446, 100
      %v793 = vpop.permute.xlu0 %792
      %794 = vrot.lane.b32.xlu0 %v531, 100
      %v795 = vpop.permute.xlu0 %794
      %796 = vrot.lane.b32.xlu0 %v452, 100
      %v797 = vpop.permute.xlu0 %796
      %798 = vrot.lane.b32.xlu0 %v536, 100
      %v799 = vpop.permute.xlu0 %798
      %vm800 = vcmask 818176
      %v801 = vsel %vm800, %v785, %v787
      %v802 = vsel %vm800, %v789, %v791
      %v803 = vsel %vm800, %v793, %v795
      %v804 = vsel %vm800, %v797, %v799
      %809 = vst.msk [vmem:[%s170 + $0x8] sm:$0xff] %vm645, %v801
      %810 = vst.msk [vmem:[%s170 + $0x18] sm:$0xff] %vm645, %v802
      %811 = vst.msk [vmem:[%s170 + $0x28] sm:$0xff] %vm645, %v803
      %812 = vst.msk [vmem:[%s170 + $0x38] sm:$0xff] %vm645, %v804
      %813 = vrot.lane.b32.xlu0 %v521, 98
      %v814 = vpop.permute.xlu0 %813
      %815 = vrot.lane.b32.xlu0 %v526, 98
      %v816 = vpop.permute.xlu0 %815
      %817 = vrot.lane.b32.xlu0 %v531, 98
      %v818 = vpop.permute.xlu0 %817
      %819 = vrot.lane.b32.xlu0 %v536, 98
      %v820 = vpop.permute.xlu0 %819
      %825 = vst.msk [vmem:[%s170 + $0x8] sm:$0xff] %vm679, %v814
      %826 = vst.msk [vmem:[%s170 + $0x18] sm:$0xff] %vm679, %v816
      %827 = vst.msk [vmem:[%s170 + $0x28] sm:$0xff] %vm679, %v818
      %828 = vst.msk [vmem:[%s170 + $0x38] sm:$0xff] %vm679, %v820
      %p829 = scmp.lt.s32.totalorder %s14, 1
      %s830 = scalar_select %p829, %s14, 1
      %s831 = smul.addr %s830, 8
      %s832 = smul.addr %s831, 8
      %s833 = scalar_lea.vmem %s3, %s832
      // Predicated region
      $region33: #{conv2d_3x32.1} parent=31 // pred_check
        %p834 = pneg %p100
      $region34: #{conv2d_3x32.1} parent=31 // pred_check_branch
        %836 = sbr.rel (%p834) target = $region36
      $region35: #{conv2d_3x32.1} parent=31 // pred_region
        _
      $region36: #{conv2d_3x32.1} parent=31 // pred_fallthru
        _
    $region32: #{conv2d_3x32.1} parent=5 // pred_fallthru
      _
    %p837 = scmp.le.s32.totalorder 2, %s9
    // Predicated region
    $region37: #{conv2d_3x32.1} parent=5 // pred_check
      %p838 = pneg %p837
    $region38: #{conv2d_3x32.1} parent=5 // pred_check_branch
      %840 = sbr.rel (%p838) target = $region40
    $region39: #{conv2d_3x32.1} parent=5 // pred_region
      %s841 = ssub.s32 %s9, 2
      // Predicated region
      $region41: #{conv2d_3x32.1} parent=39 // pred_check
        %p842 = pneg %p106
      $region42: #{conv2d_3x32.1} parent=39 // pred_check_branch
        %844 = sbr.rel (%p842) target = $region44
      $region43: #{conv2d_3x32.1} parent=39 // pred_region
        %p845 = scmp.lt.s32.totalorder %s15, 1
        %s846 = scalar_select %p845, %s15, 1
        %s847 = smul.addr %s846, 8
        %s848 = smul.addr %s847, 8
        %s849 = scalar_lea.vmem %s3, %s848
      $region44: #{conv2d_3x32.1} parent=39 // pred_fallthru
        _
    $region40: #{conv2d_3x32.1} parent=5 // pred_fallthru
      _
  $region6: #{conv2d_3x32.1} parent=0 // loop_footer
    %s13 = sadd.s32 1, %s9
  $region7: #{conv2d_3x32.1} parent=0 // loop_footer_branch
    %8 = sbr.rel target = $region3
  $region8: #{conv2d_3x32.1} parent=0 // loop_exit
    _

</llo_original>
